<compile_context>
chip_gen: v7x
topology: tpu7x:2x2x1
jax: 0.10.0
libtpu: 0.0.40
codegen_flags: <defaults>
</compile_context>

<pallas_src>
import functools

import jax
import jax.numpy as jnp
from jax.experimental import pallas as pl
from jax.experimental.pallas import tpu as pltpu

_PAIRWISE_EPS = 1e-6  # matches torch.nn.functional.pairwise_distance default eps
_MIB = 1024 * 1024


def _tpu_info():
    try:
        return pltpu.get_tpu_info()
    except Exception:
        return None


def _vmem_capacity_bytes(info):
    for attr in ("vmem_capacity_bytes", "vmem_bytes", "vmem_size_bytes"):
        val = getattr(info, attr, None) if info is not None else None
        if val:
            return int(val)
    return 64 * _MIB  # conservative default (v7x per-TensorCore VMEM)


def _num_tensorcores():
    # Only v7x has 2 TensorCores per chip that need an explicit CORE_PARALLEL
    # split; v5e/v6e are single-TC.  Detection is deliberately conservative.
    try:
        kind = jax.devices()[0].device_kind.lower()
    except Exception:
        kind = ""
    return 2 if "v7" in kind else 1


def _contrastive_kernel(x1_ref, x2_ref, lbl_ref, out_ref, acc_ref, *,
                        margin, rows_valid, k, steps, two_axis,
                        label_resident, needs_mask):
    if two_axis:
        c = pl.program_id(0)                 # core / partial-sum index (CORE_PARALLEL)
        i = pl.program_id(1)                 # row-block index          (arbitrary)
        n_inner = pl.num_programs(1)
    else:
        c = 0
        i = pl.program_id(0)
        n_inner = pl.num_programs(0)

    tb, dc = x1_ref.shape
    d_orig = dc // k                         # original embedding dim per packed segment
    blk = c * steps + i                      # logical (unclamped) block index

    @pl.when(i == 0)
    def _init():
        acc_ref[...] = jnp.zeros_like(acc_ref)

    x1 = x1_ref[...].astype(jnp.float32)
    x2 = x2_ref[...].astype(jnp.float32)
    diff = x1 - x2 + jnp.float32(_PAIRWISE_EPS)           # (tb, dc)
    sq = diff * diff

    if k == 1:
        sq_sum = jnp.sum(sq, axis=1, keepdims=True)       # (tb, 1) == d**2
    else:
        # Segmented (per original row) sum over each D-lane slice of the folded row.
        parts = [jnp.sum(sq[:, s * d_orig:(s + 1) * d_orig], axis=1, keepdims=True)
                 for s in range(k)]
        sq_sum = jnp.concatenate(parts, axis=1)           # (tb, k)

    d = jnp.sqrt(sq_sum)

    if label_resident:
        # Whole label slab lives in VMEM; slice the rows for this block.
        start = pl.multiple_of(blk * tb, 8)  # tb % 8 == 0 whenever blk can be > 0
        lbl = lbl_ref[pl.ds(start, tb), :]                 # (tb, k)
    else:
        lbl = lbl_ref[...]                                 # (tb, k)

    hinge = jnp.maximum(jnp.float32(margin) - d, 0.0)
    per_row = lbl * sq_sum + (1.0 - lbl) * (hinge * hinge)  # (tb, k)

    if not needs_mask:
        acc_ref[...] += per_row
    else:
        # Only tail / grid-padded blocks pay for the iota+compare+select.
        is_tail = (blk + 1) * tb > rows_valid

        @pl.when(jnp.logical_not(is_tail))
        def _acc_full():
            acc_ref[...] += per_row

        @pl.when(is_tail)
        def _acc_tail():
            row = blk * tb + jax.lax.broadcasted_iota(jnp.int32, per_row.shape, 0)
            acc_ref[...] += jnp.where(row < rows_valid, per_row, 0.0)

    @pl.when(i == n_inner - 1)
    def _finalize():
        out_ref[...] = jnp.sum(acc_ref[...], keepdims=True).reshape(1, 1, 1)


def contrastive_loss(output1, output2, label, margin=2.0, *, block_rows=None):
    """Pallas TPU implementation of ContrastiveLoss.forward.

    output1, output2: (B, D) embeddings (f32 or bf16 — streamed in native dtype).
    label:            (B,)   0/1 labels.
    Returns a scalar float32 loss (mean over the batch).
    """
    output1 = jnp.asarray(output1)
    output2 = jnp.asarray(output2)
    if not jnp.issubdtype(output1.dtype, jnp.floating):
        output1 = output1.astype(jnp.float32)
    output2 = output2.astype(output1.dtype)
    label = jnp.asarray(label, jnp.float32).reshape(-1)

    B, D = output1.shape
    itemsize = jnp.dtype(output1.dtype).itemsize

    info = _tpu_info()
    vmem_cap = _vmem_capacity_bytes(info)
    nc_max = _num_tensorcores()

    # ---- lane-dense folding for narrow embeddings (free bitcast reshape).
    k = 1
    if D < 128 and 128 % D == 0 and B % (128 // D) == 0:
        k = 128 // D
    rows = B // k                      # effective rows streamed through the kernel
    dc = k * D                         # lane-dense row width
    x1 = output1.reshape(rows, dc)
    x2 = output2.reshape(rows, dc)
    lbl = label.reshape(rows, k)

    # ---- block sizing: byte-based target so per-grid-step overhead is amortized.
    d_lanes = ((dc + 127) // 128) * 128
    row_bytes = d_lanes * itemsize
    if block_rows is not None:
        tb = max(8, (int(block_rows) // 8) * 8)
    else:
        target = 8 * _MIB if vmem_cap >= 96 * _MIB else 4 * _MIB
        target = min(target, max(_MIB, (vmem_cap // 2) // 4))   # 2 inputs x 2 buffers
        tb = max(8, (target // row_bytes) // 8 * 8)
    if rows <= tb:
        tb = rows                      # single full block (full dims are always legal)
    n_blocks = pl.cdiv(rows, tb)
    block_bytes = tb * row_bytes

    # ---- TensorCore split (v7x): one partial sum per core on a CORE_PARALLEL axis.
    nc = nc_max if (nc_max > 1 and n_blocks >= nc_max) else 1
    steps = pl.cdiv(n_blocks, nc)
    padded_blocks = nc * steps                      # >= n_blocks (uneven split padded)
    needs_mask = (rows % tb != 0) or (padded_blocks != n_blocks)

    # ---- label stream: VMEM-resident unless its lane-padded footprint gets large.
    label_resident = padded_blocks * tb * 128 * 4 <= 4 * _MIB
    if label_resident:
        pad = padded_blocks * tb - rows
        if pad:
            lbl = jnp.concatenate([lbl, jnp.zeros((pad, k), jnp.float32)], axis=0)

    # ---- grid, index maps, dimension semantics.
    last_blk = n_blocks - 1
    if nc > 1:
        if padded_blocks == n_blocks:
            xmap = lambda c, i: (c * steps + i, 0)
        else:
            # Clamp so padded grid positions issue in-range DMAs; the in-kernel row
            # mask (keyed on the unclamped block index) zeroes their contribution.
            xmap = lambda c, i: (jnp.minimum(c * steps + i, last_blk), 0)
        lbl_map = (lambda c, i: (0, 0)) if label_resident else xmap
        out_map = lambda c, i: (c, 0, 0)
        grid = (nc, steps)
        dims = (getattr(pltpu, "CORE_PARALLEL", "parallel"),
                getattr(pltpu, "ARBITRARY", "arbitrary"))
    else:
        xmap = lambda i: (i, 0)
        lbl_map = (lambda i: (0, 0)) if label_resident else xmap
        out_map = lambda i: (0, 0, 0)
        grid = (steps,)
        dims = ("arbitrary",)

    # Deepen the pipeline when blocks are small (fixed DMA issue latency dominates).
    multibuffer = block_bytes < _MIB and n_blocks >= 4

    def emb_spec():
        if multibuffer and hasattr(pl, "Buffered"):
            try:
                return pl.BlockSpec((tb, dc), xmap, pipeline_mode=pl.Buffered(3))
            except TypeError:
                pass
        return pl.BlockSpec((tb, dc), xmap)

    in_specs = [emb_spec(), emb_spec()]
    if label_resident:
        in_specs.append(pl.BlockSpec((lbl.shape[0], k), lbl_map))
    else:
        in_specs.append(pl.BlockSpec((tb, k), lbl_map))

    kernel = functools.partial(
        _contrastive_kernel, margin=float(margin), rows_valid=rows, k=k,
        steps=steps, two_axis=(nc > 1), label_resident=label_resident,
        needs_mask=needs_mask)

    cost = pl.CostEstimate(
        flops=5 * B * D + 10 * B,
        transcendentals=B,                                   # one sqrt per row
        bytes_accessed=2 * B * D * itemsize + 4 * B + 4 * nc)

    partials = pl.pallas_call(
        kernel,
        out_shape=jax.ShapeDtypeStruct((nc, 1, 1), jnp.float32),
        grid_spec=pltpu.PrefetchScalarGridSpec(
            num_scalar_prefetch=0,
            grid=grid,
            in_specs=in_specs,
            out_specs=pl.BlockSpec((1, 1, 1), out_map),
            scratch_shapes=[pltpu.VMEM((tb, k), jnp.float32)]),
        compiler_params=pltpu.CompilerParams(
            dimension_semantics=dims,
            vmem_limit_bytes=int(min(vmem_cap * 3 // 4, 100 * _MIB))),
        cost_estimate=cost,
    )(x1, x2, lbl)

    return jnp.sum(partials) / jnp.float32(B)


def _reference(output1, output2, label, margin=2.0):
    # Pure-JAX reference mirroring the PyTorch code exactly.
    x1 = jnp.asarray(output1, jnp.float32)
    x2 = jnp.asarray(output2, jnp.float32)
    d = jnp.sqrt(jnp.sum((x1 - x2 + _PAIRWISE_EPS) ** 2, axis=-1))
    loss = label * d ** 2 + (1.0 - label) * jnp.clip(margin - d, 0.0) ** 2
    return jnp.mean(loss)


if __name__ == "__main__":
    key = jax.random.PRNGKey(0)
    k1, k2, k3, k4, k5, k6 = jax.random.split(key, 6)

    # Case 1: lane-dense embeddings, automatic (single resident block) tiling.
    B, D = 256, 128
    x1 = jax.random.normal(k1, (B, D), dtype=jnp.float32)
    x2 = jax.random.normal(k2, (B, D), dtype=jnp.float32)
    lbl = jax.random.bernoulli(k3, 0.5, (B,)).astype(jnp.float32)
    out = jax.block_until_ready(contrastive_loss(x1, x2, lbl, margin=2.0))
    ref = _reference(x1, x2, lbl, margin=2.0)
    assert jnp.allclose(out, ref, rtol=1e-5, atol=1e-5), (out, ref)

    # Case 2: multi-block pipeline with an exactly-dividing forced tile (no masking,
    # resident label slab, deepened buffering on small blocks).
    out_b = jax.block_until_ready(contrastive_loss(x1, x2, lbl, margin=2.0, block_rows=64))
    assert jnp.allclose(out_b, ref, rtol=1e-5, atol=1e-5), (out_b, ref)

    # Case 3: ragged batch + narrow D -> lane-dense folding (k=4), partial tail block
    # mask path, resident label, small-block pipeline.
    B2, D2 = 200, 32
    x1b = jax.random.normal(k4, (B2, D2), dtype=jnp.float32)
    x2b = jax.random.normal(k5, (B2, D2), dtype=jnp.float32)
    lblb = jax.random.bernoulli(k6, 0.5, (B2,)).astype(jnp.float32)
    out2 = jax.block_until_ready(
        contrastive_loss(x1b, x2b, lblb, margin=2.0, block_rows=16))
    ref2 = _reference(x1b, x2b, lblb, margin=2.0)
    assert jnp.allclose(out2, ref2, rtol=1e-5, atol=1e-5), (out2, ref2)

    # Case 4: bf16 ingress (half the HBM traffic), f32 accumulation in-kernel.
    out3 = jax.block_until_ready(
        contrastive_loss(x1.astype(jnp.bfloat16), x2.astype(jnp.bfloat16), lbl, margin=2.0))
    ref3 = _reference(x1.astype(jnp.bfloat16), x2.astype(jnp.bfloat16), lbl, margin=2.0)
    assert jnp.allclose(out3, ref3, rtol=1e-4, atol=1e-4), (out3, ref3)

    print("KERNEL_OK")
</pallas_src>

<mosaic_0001>
module attributes {stable_mosaic.version = 11 : i64} {
  func.func @_contrastive_kernel(%arg0: i32, %arg1: memref<256x128xf32, #tpu.memory_space<vmem>>, %arg2: memref<256x128xf32, #tpu.memory_space<vmem>>, %arg3: memref<256x1xf32, #tpu.memory_space<vmem>>, %arg4: memref<1x1x1xf32, #tpu.memory_space<vmem>>, %arg5: memref<256x1xf32, #tpu.memory_space<vmem>>) attributes {dimension_semantics = [#tpu.dimension_semantics<arbitrary>], iteration_bounds = array<i64: 1>, scalar_prefetch = 0 : i64, scratch_operands = 1 : i64, tpu.core_type = #tpu.core_type<tc>, window_params = [{transform_indices = @transform_0, window_bounds = array<i64: 256, 128>}, {transform_indices = @transform_1, window_bounds = array<i64: 256, 128>}, {pipeline_mode = #tpu.pipeline_mode<synchronous>, transform_indices = @transform_2, window_bounds = array<i64: 256, 1>}, {pipeline_mode = #tpu.pipeline_mode<synchronous>, transform_indices = @transform_3, window_bounds = array<i64: 1, 1, 1>}]} {
    %c0_i32 = arith.constant 0 : i32
    %0 = arith.addi %c0_i32, %arg0 : i32
    %c0_i32_0 = arith.constant 0 : i32
    %1 = arith.cmpi eq, %arg0, %c0_i32_0 : i32
    %2 = arith.extui %1 : i1 to i32
    %c0_i32_1 = arith.constant 0 : i32
    %3 = arith.cmpi ne, %2, %c0_i32_1 : i32
    scf.if %3 {
      %cst_16 = arith.constant 0.000000e+00 : f32
      %33 = vector.broadcast %cst_16 : f32 to vector<256x1xf32>
      %c0_17 = arith.constant 0 : index
      %c0_18 = arith.constant 0 : index
      %34 = vector.load %arg5[%c0_17, %c0_18] : memref<256x1xf32, #tpu.memory_space<vmem>>, vector<256x1xf32>
      tpu.vector_store %arg5[%c0_17, %c0_18], %33 {strides = array<i32>} : memref<256x1xf32, #tpu.memory_space<vmem>>, vector<256x1xf32>,
    } else {
    }
    %c0 = arith.constant 0 : index
    %c0_2 = arith.constant 0 : index
    %4 = vector.load %arg1[%c0, %c0_2] : memref<256x128xf32, #tpu.memory_space<vmem>>, vector<256x128xf32>
    %c0_3 = arith.constant 0 : index
    %c0_4 = arith.constant 0 : index
    %5 = vector.load %arg2[%c0_3, %c0_4] : memref<256x128xf32, #tpu.memory_space<vmem>>, vector<256x128xf32>
    %6 = arith.subf %4, %5 : vector<256x128xf32>
    %cst = arith.constant 9.99999997E-7 : f32
    %7 = vector.broadcast %cst : f32 to vector<256x128xf32>
    %8 = arith.addf %6, %7 : vector<256x128xf32>
    %9 = arith.mulf %8, %8 : vector<256x128xf32>
    %cst_5 = arith.constant dense<0.000000e+00> : vector<256xf32>
    %10 = vector.multi_reduction <add>, %9, %cst_5 [1] : vector<256x128xf32> to vector<256xf32>
    %11 = vector.shape_cast %10 : vector<256xf32> to vector<256x1xf32>
    %12 = math.sqrt %11 : vector<256x1xf32>
    %c256_i32 = arith.constant 256 : i32
    %13 = arith.muli %0, %c256_i32 : i32
    %14 = tpu.assume_multiple %13, 8 : i32
    %15 = arith.index_cast %14 : i32 to index
    %c0_6 = arith.constant 0 : index
    %16 = vector.load %arg3[%15, %c0_6] : memref<256x1xf32, #tpu.memory_space<vmem>>, vector<256x1xf32>
    %cst_7 = arith.constant 2.000000e+00 : f32
    %17 = vector.broadcast %cst_7 : f32 to vector<256x1xf32>
    %18 = arith.subf %17, %12 : vector<256x1xf32>
    %cst_8 = arith.constant 0.000000e+00 : f32
    %19 = vector.broadcast %cst_8 : f32 to vector<256x1xf32>
    %20 = arith.maximumf %18, %19 : vector<256x1xf32>
    %21 = arith.mulf %16, %11 : vector<256x1xf32>
    %cst_9 = arith.constant 1.000000e+00 : f32
    %22 = vector.broadcast %cst_9 : f32 to vector<256x1xf32>
    %23 = arith.subf %22, %16 : vector<256x1xf32>
    %24 = arith.mulf %20, %20 : vector<256x1xf32>
    %25 = arith.mulf %23, %24 : vector<256x1xf32>
    %26 = arith.addf %21, %25 : vector<256x1xf32>
    %c0_10 = arith.constant 0 : index
    %c0_11 = arith.constant 0 : index
    %27 = vector.load %arg5[%c0_10, %c0_11] : memref<256x1xf32, #tpu.memory_space<vmem>>, vector<256x1xf32>
    %28 = arith.addf %27, %26 : vector<256x1xf32>
    %c0_12 = arith.constant 0 : index
    %c0_13 = arith.constant 0 : index
    %29 = vector.load %arg5[%c0_12, %c0_13] : memref<256x1xf32, #tpu.memory_space<vmem>>, vector<256x1xf32>
    tpu.vector_store %arg5[%c0_12, %c0_13], %28 {strides = array<i32>} : memref<256x1xf32, #tpu.memory_space<vmem>>, vector<256x1xf32>,
    %c0_i32_14 = arith.constant 0 : i32
    %30 = arith.cmpi eq, %arg0, %c0_i32_14 : i32
    %31 = arith.extui %30 : i1 to i32
    %c0_i32_15 = arith.constant 0 : i32
    %32 = arith.cmpi ne, %31, %c0_i32_15 : i32
    scf.if %32 {
      %c0_16 = arith.constant 0 : index
      %c0_17 = arith.constant 0 : index
      %33 = vector.load %arg5[%c0_16, %c0_17] : memref<256x1xf32, #tpu.memory_space<vmem>>, vector<256x1xf32>
      %34 = vector.shape_cast %33 : vector<256x1xf32> to vector<1x256x1xf32>
      %cst_18 = arith.constant dense<0.000000e+00> : vector<1xf32>
      %35 = vector.multi_reduction <add>, %34, %cst_18 [1, 2] : vector<1x256x1xf32> to vector<1xf32>
      %36 = vector.shape_cast %35 : vector<1xf32> to vector<1x1x1xf32>
      %37 = vector.extract %36[0, 0, 0] : f32 from vector<1x1x1xf32>
      %38 = vector.broadcast %37 : f32 to vector<1x1xf32>
      %39 = vector.shape_cast %38 : vector<1x1xf32> to vector<1x1x1xf32>
      %c0_19 = arith.constant 0 : index
      %c0_20 = arith.constant 0 : index
      %c0_21 = arith.constant 0 : index
      %40 = vector.load %arg4[%c0_19, %c0_20, %c0_21] : memref<1x1x1xf32, #tpu.memory_space<vmem>>, vector<1x1x1xf32>
      tpu.vector_store %arg4[%c0_19, %c0_20, %c0_21], %39 {strides = array<i32>} : memref<1x1x1xf32, #tpu.memory_space<vmem>>, vector<1x1x1xf32>,
    } else {
    }
    return
  }
  func.func @transform_0(%arg0: i32) -> (i32, i32) {
    %c0_i32 = arith.constant 0 : i32
    %c0_i32_0 = arith.constant 0 : i32
    return %arg0, %c0_i32 : i32, i32
  }
  func.func @transform_1(%arg0: i32) -> (i32, i32) {
    %c0_i32 = arith.constant 0 : i32
    %c0_i32_0 = arith.constant 0 : i32
    return %arg0, %c0_i32 : i32, i32
  }
  func.func @transform_2(%arg0: i32) -> (i32, i32) {
    %c0_i32 = arith.constant 0 : i32
    %c0_i32_0 = arith.constant 0 : i32
    %c0_i32_1 = arith.constant 0 : i32
    return %c0_i32, %c0_i32_0 : i32, i32
  }
  func.func @transform_3(%arg0: i32) -> (i32, i32, i32) {
    %c0_i32 = arith.constant 0 : i32
    %c0_i32_0 = arith.constant 0 : i32
    %c0_i32_1 = arith.constant 0 : i32
    %c0_i32_2 = arith.constant 0 : i32
    return %c0_i32, %c0_i32_0, %c0_i32_1 : i32, i32, i32
  }
}

</mosaic_0001>

<llo_original>
// kernel: tpu_custom_call.1
$region0: #{tpu_custom_call.1}
  #allocation0 [shape = 'u32[]', space=smem, size = 0x4, offset = 0x4, fixed_abs, tag = 'smem constant byte address 0x4 - core index']
  #allocation1 [shape = 'u32[144,128]{1,0:T(1,128)}', space=vmem, size = 0x12000, scoped, tag = 'internal scratch']
  #allocation2 [shape = 'f32[256,1]{1,0:T(8,128)}', space=vmem, size = 0x20000, scoped, tag = 'scratch operand']
  %s0 = inlined_call_operand.vmem [shape: f32[256,128], index: 0, kind: input, shape index: {}]
  %s1 = inlined_call_operand.hbm [shape: f32[256,128], index: 1, kind: input, shape index: {}]
  %s2 = inlined_call_operand.vmem [shape: f32[256,1], index: 2, kind: input, shape index: {}]
  %s3 = inlined_call_operand.hbm [shape: f32[1,1,1], index: 3, kind: output, shape index: {}]
  %s4 = sld [smem:[#allocation0]]
  $region34: #{tpu_custom_call.1} parent=0
    _
  %s6 = ssub.s32 1, %s4
  %s7 = scalar_select 0, %s6, %s4
  $region1: #{tpu_custom_call.1} parent=0
    #allocation3 [shape = 'u8[131072]{0}', space=vmem, size = 0x20000, scoped, tag = 'input window, operand 1, single buffered']
    #allocation4 [shape = 's32[1]{0}', space=sflag, size = 0x4, scoped, tag = 'scoped memory for tpu_custom_call.1']
    #allocation5 [shape = 's32[1]{0}', space=sflag, size = 0x4, scoped, tag = 'scoped memory for tpu_custom_call.1']
    #allocation6 [shape = 'u8[512]{0}', space=vmem, size = 0x400, scoped, tag = 'output window, operand 0, single buffered']
    %8 = vsyncpa [#allocation4], 0
    %9 = vsyncpa [#allocation5], 0
    // Predicated region
    $region2: #{tpu_custom_call.1} parent=1 // pred_check
      _
    $region3: #{tpu_custom_call.1} parent=1 // pred_check_branch
      %11 = sbr.rel (0) target = $region5
    $region4: #{tpu_custom_call.1} parent=1 // pred_region
      _
    $region5: #{tpu_custom_call.1} parent=1 // pred_fallthru
      _
    // Predicated region
    $region6: #{tpu_custom_call.1} parent=1 // pred_check
      _
    $region7: #{tpu_custom_call.1} parent=1 // pred_check_branch
      %13 = sbr.rel (0) target = $region9
    $region8: #{tpu_custom_call.1} parent=1 // pred_region
      %s15 = ssub.s32 4096, 4096
      %16 = vsyncadd [#allocation4], %s15
      %s17 = sshll.u32 [#allocation3], 4
      %s18 = int_to_ptr.vmem [resolvable:$true] %s17
      %23 = dma.hbm_to_vmem [thread:$0]  %s1, 4096, %s18, [#allocation4], 128, 128, 8
    $region9: #{tpu_custom_call.1} parent=1 // pred_fallthru
      _
    // Predicated region
    $region10: #{tpu_custom_call.1} parent=1 // pred_check
      _
    $region11: #{tpu_custom_call.1} parent=1 // pred_check_branch
      %25 = sbr.rel (0) target = $region13
    $region12: #{tpu_custom_call.1} parent=1 // pred_region
      _
    $region13: #{tpu_custom_call.1} parent=1 // pred_fallthru
      _
    // Predicated region
    $region14: #{tpu_custom_call.1} parent=1 // pred_check
      _
    $region15: #{tpu_custom_call.1} parent=1 // pred_check_branch
      %27 = sbr.rel (0) target = $region17
    $region16: #{tpu_custom_call.1} parent=1 // pred_region
      %28 = dma.done [#allocation4], 4096
    $region17: #{tpu_custom_call.1} parent=1 // pred_fallthru
      _
    %p29 = scmp.eq.s32.totalorder 0, 0
    // Predicated region
    $region18: #{tpu_custom_call.1} parent=1 // pred_check
      %p30 = pneg %p29
    $region19: #{tpu_custom_call.1} parent=1 // pred_check_branch
      %32 = sbr.rel (%p30) target = $region21
    $region20: #{tpu_custom_call.1} parent=1 // pred_region
      %vm33 = vcmask 7168
      %34 = vst.msk [vmem:[#allocation2] sm:$0xff] %vm33, 0.0
      %35 = vst.msk [vmem:[#allocation2 + $0x8] sm:$0xff] %vm33, 0.0
      %36 = vst.msk [vmem:[#allocation2 + $0x10] sm:$0xff] %vm33, 0.0
      %37 = vst.msk [vmem:[#allocation2 + $0x18] sm:$0xff] %vm33, 0.0
      %38 = vst.msk [vmem:[#allocation2 + $0x20] sm:$0xff] %vm33, 0.0
      %39 = vst.msk [vmem:[#allocation2 + $0x28] sm:$0xff] %vm33, 0.0
      %40 = vst.msk [vmem:[#allocation2 + $0x30] sm:$0xff] %vm33, 0.0
      %41 = vst.msk [vmem:[#allocation2 + $0x38] sm:$0xff] %vm33, 0.0
      %42 = vst.msk [vmem:[#allocation2 + $0x40] sm:$0xff] %vm33, 0.0
      %43 = vst.msk [vmem:[#allocation2 + $0x48] sm:$0xff] %vm33, 0.0
      %44 = vst.msk [vmem:[#allocation2 + $0x50] sm:$0xff] %vm33, 0.0
      %45 = vst.msk [vmem:[#allocation2 + $0x58] sm:$0xff] %vm33, 0.0
      %46 = vst.msk [vmem:[#allocation2 + $0x60] sm:$0xff] %vm33, 0.0
      %47 = vst.msk [vmem:[#allocation2 + $0x68] sm:$0xff] %vm33, 0.0
      %48 = vst.msk [vmem:[#allocation2 + $0x70] sm:$0xff] %vm33, 0.0
      %49 = vst.msk [vmem:[#allocation2 + $0x78] sm:$0xff] %vm33, 0.0
      %50 = vst.msk [vmem:[#allocation2 + $0x80] sm:$0xff] %vm33, 0.0
      %51 = vst.msk [vmem:[#allocation2 + $0x88] sm:$0xff] %vm33, 0.0
      %52 = vst.msk [vmem:[#allocation2 + $0x90] sm:$0xff] %vm33, 0.0
      %53 = vst.msk [vmem:[#allocation2 + $0x98] sm:$0xff] %vm33, 0.0
      %54 = vst.msk [vmem:[#allocation2 + $0xa0] sm:$0xff] %vm33, 0.0
      %55 = vst.msk [vmem:[#allocation2 + $0xa8] sm:$0xff] %vm33, 0.0
      %56 = vst.msk [vmem:[#allocation2 + $0xb0] sm:$0xff] %vm33, 0.0
      %57 = vst.msk [vmem:[#allocation2 + $0xb8] sm:$0xff] %vm33, 0.0
      %58 = vst.msk [vmem:[#allocation2 + $0xc0] sm:$0xff] %vm33, 0.0
      %59 = vst.msk [vmem:[#allocation2 + $0xc8] sm:$0xff] %vm33, 0.0
      %60 = vst.msk [vmem:[#allocation2 + $0xd0] sm:$0xff] %vm33, 0.0
      %61 = vst.msk [vmem:[#allocation2 + $0xd8] sm:$0xff] %vm33, 0.0
      %62 = vst.msk [vmem:[#allocation2 + $0xe0] sm:$0xff] %vm33, 0.0
      %63 = vst.msk [vmem:[#allocation2 + $0xe8] sm:$0xff] %vm33, 0.0
      %64 = vst.msk [vmem:[#allocation2 + $0xf0] sm:$0xff] %vm33, 0.0
      %65 = vst.msk [vmem:[#allocation2 + $0xf8] sm:$0xff] %vm33, 0.0
    $region21: #{tpu_custom_call.1} parent=1 // pred_fallthru
      _
    %v66 = vld [vmem:[%s0] sm:$0xff]
    %v67 = vld [vmem:[%s0 + $0x8] sm:$0xff]
    %v68 = vld [vmem:[%s0 + $0x10] sm:$0xff]
    %v69 = vld [vmem:[%s0 + $0x18] sm:$0xff]
    %v70 = vld [vmem:[%s0 + $0x20] sm:$0xff]
    %v71 = vld [vmem:[%s0 + $0x28] sm:$0xff]
    %v72 = vld [vmem:[%s0 + $0x30] sm:$0xff]
    %v73 = vld [vmem:[%s0 + $0x38] sm:$0xff]
    %v74 = vld [vmem:[%s0 + $0x40] sm:$0xff]
    %v75 = vld [vmem:[%s0 + $0x48] sm:$0xff]
    %v76 = vld [vmem:[%s0 + $0x50] sm:$0xff]
    %v77 = vld [vmem:[%s0 + $0x58] sm:$0xff]
    %v78 = vld [vmem:[%s0 + $0x60] sm:$0xff]
    %v79 = vld [vmem:[%s0 + $0x68] sm:$0xff]
    %v80 = vld [vmem:[%s0 + $0x70] sm:$0xff]
    %v81 = vld [vmem:[%s0 + $0x78] sm:$0xff]
    %v82 = vld [vmem:[%s0 + $0x80] sm:$0xff]
    %v83 = vld [vmem:[%s0 + $0x88] sm:$0xff]
    %v84 = vld [vmem:[%s0 + $0x90] sm:$0xff]
    %v85 = vld [vmem:[%s0 + $0x98] sm:$0xff]
    %v86 = vld [vmem:[%s0 + $0xa0] sm:$0xff]
    %v87 = vld [vmem:[%s0 + $0xa8] sm:$0xff]
    %v88 = vld [vmem:[%s0 + $0xb0] sm:$0xff]
    %v89 = vld [vmem:[%s0 + $0xb8] sm:$0xff]
    %v90 = vld [vmem:[%s0 + $0xc0] sm:$0xff]
    %v91 = vld [vmem:[%s0 + $0xc8] sm:$0xff]
    %v92 = vld [vmem:[%s0 + $0xd0] sm:$0xff]
    %v93 = vld [vmem:[%s0 + $0xd8] sm:$0xff]
    %v94 = vld [vmem:[%s0 + $0xe0] sm:$0xff]
    %v95 = vld [vmem:[%s0 + $0xe8] sm:$0xff]
    %v96 = vld [vmem:[%s0 + $0xf0] sm:$0xff]
    %v97 = vld [vmem:[%s0 + $0xf8] sm:$0xff]
    %v98 = vld [vmem:[#allocation3] sm:$0xff]
    %v99 = vld [vmem:[#allocation3 + $0x8] sm:$0xff]
    %v100 = vld [vmem:[#allocation3 + $0x10] sm:$0xff]
    %v101 = vld [vmem:[#allocation3 + $0x18] sm:$0xff]
    %v102 = vld [vmem:[#allocation3 + $0x20] sm:$0xff]
    %v103 = vld [vmem:[#allocation3 + $0x28] sm:$0xff]
    %v104 = vld [vmem:[#allocation3 + $0x30] sm:$0xff]
    %v105 = vld [vmem:[#allocation3 + $0x38] sm:$0xff]
    %v106 = vld [vmem:[#allocation3 + $0x40] sm:$0xff]
    %v107 = vld [vmem:[#allocation3 + $0x48] sm:$0xff]
    %v108 = vld [vmem:[#allocation3 + $0x50] sm:$0xff]
    %v109 = vld [vmem:[#allocation3 + $0x58] sm:$0xff]
    %v110 = vld [vmem:[#allocation3 + $0x60] sm:$0xff]
    %v111 = vld [vmem:[#allocation3 + $0x68] sm:$0xff]
    %v112 = vld [vmem:[#allocation3 + $0x70] sm:$0xff]
    %v113 = vld [vmem:[#allocation3 + $0x78] sm:$0xff]
    %v114 = vld [vmem:[#allocation3 + $0x80] sm:$0xff]
    %v115 = vld [vmem:[#allocation3 + $0x88] sm:$0xff]
    %v116 = vld [vmem:[#allocation3 + $0x90] sm:$0xff]
    %v117 = vld [vmem:[#allocation3 + $0x98] sm:$0xff]
    %v118 = vld [vmem:[#allocation3 + $0xa0] sm:$0xff]
    %v119 = vld [vmem:[#allocation3 + $0xa8] sm:$0xff]
    %v120 = vld [vmem:[#allocation3 + $0xb0] sm:$0xff]
    %v121 = vld [vmem:[#allocation3 + $0xb8] sm:$0xff]
    %v122 = vld [vmem:[#allocation3 + $0xc0] sm:$0xff]
    %v123 = vld [vmem:[#allocation3 + $0xc8] sm:$0xff]
    %v124 = vld [vmem:[#allocation3 + $0xd0] sm:$0xff]
    %v125 = vld [vmem:[#allocation3 + $0xd8] sm:$0xff]
    %v126 = vld [vmem:[#allocation3 + $0xe0] sm:$0xff]
    %v127 = vld [vmem:[#allocation3 + $0xe8] sm:$0xff]
    %v128 = vld [vmem:[#allocation3 + $0xf0] sm:$0xff]
    %v129 = vld [vmem:[#allocation3 + $0xf8] sm:$0xff]
    %v130 = vsub.f32 %v66, %v98
    %v131 = vsub.f32 %v67, %v99
    %v132 = vsub.f32 %v68, %v100
    %v133 = vsub.f32 %v69, %v101
    %v134 = vsub.f32 %v70, %v102
    %v135 = vsub.f32 %v71, %v103
    %v136 = vsub.f32 %v72, %v104
    %v137 = vsub.f32 %v73, %v105
    %v138 = vsub.f32 %v74, %v106
    %v139 = vsub.f32 %v75, %v107
    %v140 = vsub.f32 %v76, %v108
    %v141 = vsub.f32 %v77, %v109
    %v142 = vsub.f32 %v78, %v110
    %v143 = vsub.f32 %v79, %v111
    %v144 = vsub.f32 %v80, %v112
    %v145 = vsub.f32 %v81, %v113
    %v146 = vsub.f32 %v82, %v114
    %v147 = vsub.f32 %v83, %v115
    %v148 = vsub.f32 %v84, %v116
    %v149 = vsub.f32 %v85, %v117
    %v150 = vsub.f32 %v86, %v118
    %v151 = vsub.f32 %v87, %v119
    %v152 = vsub.f32 %v88, %v120
    %v153 = vsub.f32 %v89, %v121
    %v154 = vsub.f32 %v90, %v122
    %v155 = vsub.f32 %v91, %v123
    %v156 = vsub.f32 %v92, %v124
    %v157 = vsub.f32 %v93, %v125
    %v158 = vsub.f32 %v94, %v126
    %v159 = vsub.f32 %v95, %v127
    %v160 = vsub.f32 %v96, %v128
    %v161 = vsub.f32 %v97, %v129
    %v162 = vadd.f32 %v130, 1e-06
    %v163 = vadd.f32 %v131, 1e-06
    %v164 = vadd.f32 %v132, 1e-06
    %v165 = vadd.f32 %v133, 1e-06
    %v166 = vadd.f32 %v134, 1e-06
    %v167 = vadd.f32 %v135, 1e-06
    %v168 = vadd.f32 %v136, 1e-06
    %v169 = vadd.f32 %v137, 1e-06
    %v170 = vadd.f32 %v138, 1e-06
    %v171 = vadd.f32 %v139, 1e-06
    %v172 = vadd.f32 %v140, 1e-06
    %v173 = vadd.f32 %v141, 1e-06
    %v174 = vadd.f32 %v142, 1e-06
    %v175 = vadd.f32 %v143, 1e-06
    %v176 = vadd.f32 %v144, 1e-06
    %v177 = vadd.f32 %v145, 1e-06
    %v178 = vadd.f32 %v146, 1e-06
    %v179 = vadd.f32 %v147, 1e-06
    %v180 = vadd.f32 %v148, 1e-06
    %v181 = vadd.f32 %v149, 1e-06
    %v182 = vadd.f32 %v150, 1e-06
    %v183 = vadd.f32 %v151, 1e-06
    %v184 = vadd.f32 %v152, 1e-06
    %v185 = vadd.f32 %v153, 1e-06
    %v186 = vadd.f32 %v154, 1e-06
    %v187 = vadd.f32 %v155, 1e-06
    %v188 = vadd.f32 %v156, 1e-06
    %v189 = vadd.f32 %v157, 1e-06
    %v190 = vadd.f32 %v158, 1e-06
    %v191 = vadd.f32 %v159, 1e-06
    %v192 = vadd.f32 %v160, 1e-06
    %v193 = vadd.f32 %v161, 1e-06
    %v194 = vmul.f32 %v162, %v162
    %v195 = vmul.f32 %v163, %v163
    %v196 = vmul.f32 %v164, %v164
    %v197 = vmul.f32 %v165, %v165
    %v198 = vmul.f32 %v166, %v166
    %v199 = vmul.f32 %v167, %v167
    %v200 = vmul.f32 %v168, %v168
    %v201 = vmul.f32 %v169, %v169
    %v202 = vmul.f32 %v170, %v170
    %v203 = vmul.f32 %v171, %v171
    %v204 = vmul.f32 %v172, %v172
    %v205 = vmul.f32 %v173, %v173
    %v206 = vmul.f32 %v174, %v174
    %v207 = vmul.f32 %v175, %v175
    %v208 = vmul.f32 %v176, %v176
    %v209 = vmul.f32 %v177, %v177
    %v210 = vmul.f32 %v178, %v178
    %v211 = vmul.f32 %v179, %v179
    %v212 = vmul.f32 %v180, %v180
    %v213 = vmul.f32 %v181, %v181
    %v214 = vmul.f32 %v182, %v182
    %v215 = vmul.f32 %v183, %v183
    %v216 = vmul.f32 %v184, %v184
    %v217 = vmul.f32 %v185, %v185
    %v218 = vmul.f32 %v186, %v186
    %v219 = vmul.f32 %v187, %v187
    %v220 = vmul.f32 %v188, %v188
    %v221 = vmul.f32 %v189, %v189
    %v222 = vmul.f32 %v190, %v190
    %v223 = vmul.f32 %v191, %v191
    %v224 = vmul.f32 %v192, %v192
    %v225 = vmul.f32 %v193, %v193
    %226 = vadd.xlane.f32.xlu0 %v194
    %v227 = vpop.xlane.xlu0 %226
    %228 = vadd.xlane.f32.xlu0 %v195
    %v229 = vpop.xlane.xlu0 %228
    %230 = vadd.xlane.f32.xlu0 %v196
    %v231 = vpop.xlane.xlu0 %230
    %232 = vadd.xlane.f32.xlu0 %v197
    %v233 = vpop.xlane.xlu0 %232
    %234 = vadd.xlane.f32.xlu0 %v198
    %v235 = vpop.xlane.xlu0 %234
    %236 = vadd.xlane.f32.xlu0 %v199
    %v237 = vpop.xlane.xlu0 %236
    %238 = vadd.xlane.f32.xlu0 %v200
    %v239 = vpop.xlane.xlu0 %238
    %240 = vadd.xlane.f32.xlu0 %v201
    %v241 = vpop.xlane.xlu0 %240
    %242 = vadd.xlane.f32.xlu0 %v202
    %v243 = vpop.xlane.xlu0 %242
    %244 = vadd.xlane.f32.xlu0 %v203
    %v245 = vpop.xlane.xlu0 %244
    %246 = vadd.xlane.f32.xlu0 %v204
    %v247 = vpop.xlane.xlu0 %246
    %248 = vadd.xlane.f32.xlu0 %v205
    %v249 = vpop.xlane.xlu0 %248
    %250 = vadd.xlane.f32.xlu0 %v206
    %v251 = vpop.xlane.xlu0 %250
    %252 = vadd.xlane.f32.xlu0 %v207
    %v253 = vpop.xlane.xlu0 %252
    %254 = vadd.xlane.f32.xlu0 %v208
    %v255 = vpop.xlane.xlu0 %254
    %256 = vadd.xlane.f32.xlu0 %v209
    %v257 = vpop.xlane.xlu0 %256
    %258 = vadd.xlane.f32.xlu0 %v210
    %v259 = vpop.xlane.xlu0 %258
    %260 = vadd.xlane.f32.xlu0 %v211
    %v261 = vpop.xlane.xlu0 %260
    %262 = vadd.xlane.f32.xlu0 %v212
    %v263 = vpop.xlane.xlu0 %262
    %264 = vadd.xlane.f32.xlu0 %v213
    %v265 = vpop.xlane.xlu0 %264
    %266 = vadd.xlane.f32.xlu0 %v214
    %v267 = vpop.xlane.xlu0 %266
    %268 = vadd.xlane.f32.xlu0 %v215
    %v269 = vpop.xlane.xlu0 %268
    %270 = vadd.xlane.f32.xlu0 %v216
    %v271 = vpop.xlane.xlu0 %270
    %272 = vadd.xlane.f32.xlu0 %v217
    %v273 = vpop.xlane.xlu0 %272
    %274 = vadd.xlane.f32.xlu0 %v218
    %v275 = vpop.xlane.xlu0 %274
    %276 = vadd.xlane.f32.xlu0 %v219
    %v277 = vpop.xlane.xlu0 %276
    %278 = vadd.xlane.f32.xlu0 %v220
    %v279 = vpop.xlane.xlu0 %278
    %280 = vadd.xlane.f32.xlu0 %v221
    %v281 = vpop.xlane.xlu0 %280
    %282 = vadd.xlane.f32.xlu0 %v222
    %v283 = vpop.xlane.xlu0 %282
    %284 = vadd.xlane.f32.xlu0 %v223
    %v285 = vpop.xlane.xlu0 %284
    %286 = vadd.xlane.f32.xlu0 %v224
    %v287 = vpop.xlane.xlu0 %286
    %288 = vadd.xlane.f32.xlu0 %v225
    %v289 = vpop.xlane.xlu0 %288
    %v290 = vrsqrt.pop %v227
    %v291 = vmul.f32 %v227, %v290
    %vm292 = vcmp.eq.f32.partialorder %v227, inf
    %v293 = vsel %vm292, %v227, %v291
    %vm294 = vcmp.eq.f32.partialorder %v227, 0.0
    %v295 = vand.u32 %v227, 2147483648
    %v296 = vsel %vm294, %v295, %v293
    %v297 = vrsqrt.pop %v229
    %v298 = vmul.f32 %v229, %v297
    %vm299 = vcmp.eq.f32.partialorder %v229, inf
    %v300 = vsel %vm299, %v229, %v298
    %vm301 = vcmp.eq.f32.partialorder %v229, 0.0
    %v302 = vand.u32 %v229, 2147483648
    %v303 = vsel %vm301, %v302, %v300
    %v304 = vrsqrt.pop %v231
    %v305 = vmul.f32 %v231, %v304
    %vm306 = vcmp.eq.f32.partialorder %v231, inf
    %v307 = vsel %vm306, %v231, %v305
    %vm308 = vcmp.eq.f32.partialorder %v231, 0.0
    %v309 = vand.u32 %v231, 2147483648
    %v310 = vsel %vm308, %v309, %v307
    %v311 = vrsqrt.pop %v233
    %v312 = vmul.f32 %v233, %v311
    %vm313 = vcmp.eq.f32.partialorder %v233, inf
    %v314 = vsel %vm313, %v233, %v312
    %vm315 = vcmp.eq.f32.partialorder %v233, 0.0
    %v316 = vand.u32 %v233, 2147483648
    %v317 = vsel %vm315, %v316, %v314
    %v318 = vrsqrt.pop %v235
    %v319 = vmul.f32 %v235, %v318
    %vm320 = vcmp.eq.f32.partialorder %v235, inf
    %v321 = vsel %vm320, %v235, %v319
    %vm322 = vcmp.eq.f32.partialorder %v235, 0.0
    %v323 = vand.u32 %v235, 2147483648
    %v324 = vsel %vm322, %v323, %v321
    %v325 = vrsqrt.pop %v237
    %v326 = vmul.f32 %v237, %v325
    %vm327 = vcmp.eq.f32.partialorder %v237, inf
    %v328 = vsel %vm327, %v237, %v326
    %vm329 = vcmp.eq.f32.partialorder %v237, 0.0
    %v330 = vand.u32 %v237, 2147483648
    %v331 = vsel %vm329, %v330, %v328
    %v332 = vrsqrt.pop %v239
    %v333 = vmul.f32 %v239, %v332
    %vm334 = vcmp.eq.f32.partialorder %v239, inf
    %v335 = vsel %vm334, %v239, %v333
    %vm336 = vcmp.eq.f32.partialorder %v239, 0.0
    %v337 = vand.u32 %v239, 2147483648
    %v338 = vsel %vm336, %v337, %v335
    %v339 = vrsqrt.pop %v241
    %v340 = vmul.f32 %v241, %v339
    %vm341 = vcmp.eq.f32.partialorder %v241, inf
    %v342 = vsel %vm341, %v241, %v340
    %vm343 = vcmp.eq.f32.partialorder %v241, 0.0
    %v344 = vand.u32 %v241, 2147483648
    %v345 = vsel %vm343, %v344, %v342
    %v346 = vrsqrt.pop %v243
    %v347 = vmul.f32 %v243, %v346
    %vm348 = vcmp.eq.f32.partialorder %v243, inf
    %v349 = vsel %vm348, %v243, %v347
    %vm350 = vcmp.eq.f32.partialorder %v243, 0.0
    %v351 = vand.u32 %v243, 2147483648
    %v352 = vsel %vm350, %v351, %v349
    %v353 = vrsqrt.pop %v245
    %v354 = vmul.f32 %v245, %v353
    %vm355 = vcmp.eq.f32.partialorder %v245, inf
    %v356 = vsel %vm355, %v245, %v354
    %vm357 = vcmp.eq.f32.partialorder %v245, 0.0
    %v358 = vand.u32 %v245, 2147483648
    %v359 = vsel %vm357, %v358, %v356
    %v360 = vrsqrt.pop %v247
    %v361 = vmul.f32 %v247, %v360
    %vm362 = vcmp.eq.f32.partialorder %v247, inf
    %v363 = vsel %vm362, %v247, %v361
    %vm364 = vcmp.eq.f32.partialorder %v247, 0.0
    %v365 = vand.u32 %v247, 2147483648
    %v366 = vsel %vm364, %v365, %v363
    %v367 = vrsqrt.pop %v249
    %v368 = vmul.f32 %v249, %v367
    %vm369 = vcmp.eq.f32.partialorder %v249, inf
    %v370 = vsel %vm369, %v249, %v368
    %vm371 = vcmp.eq.f32.partialorder %v249, 0.0
    %v372 = vand.u32 %v249, 2147483648
    %v373 = vsel %vm371, %v372, %v370
    %v374 = vrsqrt.pop %v251
    %v375 = vmul.f32 %v251, %v374
    %vm376 = vcmp.eq.f32.partialorder %v251, inf
    %v377 = vsel %vm376, %v251, %v375
    %vm378 = vcmp.eq.f32.partialorder %v251, 0.0
    %v379 = vand.u32 %v251, 2147483648
    %v380 = vsel %vm378, %v379, %v377
    %v381 = vrsqrt.pop %v253
    %v382 = vmul.f32 %v253, %v381
    %vm383 = vcmp.eq.f32.partialorder %v253, inf
    %v384 = vsel %vm383, %v253, %v382
    %vm385 = vcmp.eq.f32.partialorder %v253, 0.0
    %v386 = vand.u32 %v253, 2147483648
    %v387 = vsel %vm385, %v386, %v384
    %v388 = vrsqrt.pop %v255
    %v389 = vmul.f32 %v255, %v388
    %vm390 = vcmp.eq.f32.partialorder %v255, inf
    %v391 = vsel %vm390, %v255, %v389
    %vm392 = vcmp.eq.f32.partialorder %v255, 0.0
    %v393 = vand.u32 %v255, 2147483648
    %v394 = vsel %vm392, %v393, %v391
    %v395 = vrsqrt.pop %v257
    %v396 = vmul.f32 %v257, %v395
    %vm397 = vcmp.eq.f32.partialorder %v257, inf
    %v398 = vsel %vm397, %v257, %v396
    %vm399 = vcmp.eq.f32.partialorder %v257, 0.0
    %v400 = vand.u32 %v257, 2147483648
    %v401 = vsel %vm399, %v400, %v398
    %v402 = vrsqrt.pop %v259
    %v403 = vmul.f32 %v259, %v402
    %vm404 = vcmp.eq.f32.partialorder %v259, inf
    %v405 = vsel %vm404, %v259, %v403
    %vm406 = vcmp.eq.f32.partialorder %v259, 0.0
    %v407 = vand.u32 %v259, 2147483648
    %v408 = vsel %vm406, %v407, %v405
    %v409 = vrsqrt.pop %v261
    %v410 = vmul.f32 %v261, %v409
    %vm411 = vcmp.eq.f32.partialorder %v261, inf
    %v412 = vsel %vm411, %v261, %v410
    %vm413 = vcmp.eq.f32.partialorder %v261, 0.0
    %v414 = vand.u32 %v261, 2147483648
    %v415 = vsel %vm413, %v414, %v412
    %v416 = vrsqrt.pop %v263
    %v417 = vmul.f32 %v263, %v416
    %vm418 = vcmp.eq.f32.partialorder %v263, inf
    %v419 = vsel %vm418, %v263, %v417
    %vm420 = vcmp.eq.f32.partialorder %v263, 0.0
    %v421 = vand.u32 %v263, 2147483648
    %v422 = vsel %vm420, %v421, %v419
    %v423 = vrsqrt.pop %v265
    %v424 = vmul.f32 %v265, %v423
    %vm425 = vcmp.eq.f32.partialorder %v265, inf
    %v426 = vsel %vm425, %v265, %v424
    %vm427 = vcmp.eq.f32.partialorder %v265, 0.0
    %v428 = vand.u32 %v265, 2147483648
    %v429 = vsel %vm427, %v428, %v426
    %v430 = vrsqrt.pop %v267
    %v431 = vmul.f32 %v267, %v430
    %vm432 = vcmp.eq.f32.partialorder %v267, inf
    %v433 = vsel %vm432, %v267, %v431
    %vm434 = vcmp.eq.f32.partialorder %v267, 0.0
    %v435 = vand.u32 %v267, 2147483648
    %v436 = vsel %vm434, %v435, %v433
    %v437 = vrsqrt.pop %v269
    %v438 = vmul.f32 %v269, %v437
    %vm439 = vcmp.eq.f32.partialorder %v269, inf
    %v440 = vsel %vm439, %v269, %v438
    %vm441 = vcmp.eq.f32.partialorder %v269, 0.0
    %v442 = vand.u32 %v269, 2147483648
    %v443 = vsel %vm441, %v442, %v440
    %v444 = vrsqrt.pop %v271
    %v445 = vmul.f32 %v271, %v444
    %vm446 = vcmp.eq.f32.partialorder %v271, inf
    %v447 = vsel %vm446, %v271, %v445
    %vm448 = vcmp.eq.f32.partialorder %v271, 0.0
    %v449 = vand.u32 %v271, 2147483648
    %v450 = vsel %vm448, %v449, %v447
    %v451 = vrsqrt.pop %v273
    %v452 = vmul.f32 %v273, %v451
    %vm453 = vcmp.eq.f32.partialorder %v273, inf
    %v454 = vsel %vm453, %v273, %v452
    %vm455 = vcmp.eq.f32.partialorder %v273, 0.0
    %v456 = vand.u32 %v273, 2147483648
    %v457 = vsel %vm455, %v456, %v454
    %v458 = vrsqrt.pop %v275
    %v459 = vmul.f32 %v275, %v458
    %vm460 = vcmp.eq.f32.partialorder %v275, inf
    %v461 = vsel %vm460, %v275, %v459
    %vm462 = vcmp.eq.f32.partialorder %v275, 0.0
    %v463 = vand.u32 %v275, 2147483648
    %v464 = vsel %vm462, %v463, %v461
    %v465 = vrsqrt.pop %v277
    %v466 = vmul.f32 %v277, %v465
    %vm467 = vcmp.eq.f32.partialorder %v277, inf
    %v468 = vsel %vm467, %v277, %v466
    %vm469 = vcmp.eq.f32.partialorder %v277, 0.0
    %v470 = vand.u32 %v277, 2147483648
    %v471 = vsel %vm469, %v470, %v468
    %v472 = vrsqrt.pop %v279
    %v473 = vmul.f32 %v279, %v472
    %vm474 = vcmp.eq.f32.partialorder %v279, inf
    %v475 = vsel %vm474, %v279, %v473
    %vm476 = vcmp.eq.f32.partialorder %v279, 0.0
    %v477 = vand.u32 %v279, 2147483648
    %v478 = vsel %vm476, %v477, %v475
    %v479 = vrsqrt.pop %v281
    %v480 = vmul.f32 %v281, %v479
    %vm481 = vcmp.eq.f32.partialorder %v281, inf
    %v482 = vsel %vm481, %v281, %v480
    %vm483 = vcmp.eq.f32.partialorder %v281, 0.0
    %v484 = vand.u32 %v281, 2147483648
    %v485 = vsel %vm483, %v484, %v482
    %v486 = vrsqrt.pop %v283
    %v487 = vmul.f32 %v283, %v486
    %vm488 = vcmp.eq.f32.partialorder %v283, inf
    %v489 = vsel %vm488, %v283, %v487
    %vm490 = vcmp.eq.f32.partialorder %v283, 0.0
    %v491 = vand.u32 %v283, 2147483648
    %v492 = vsel %vm490, %v491, %v489
    %v493 = vrsqrt.pop %v285
    %v494 = vmul.f32 %v285, %v493
    %vm495 = vcmp.eq.f32.partialorder %v285, inf
    %v496 = vsel %vm495, %v285, %v494
    %vm497 = vcmp.eq.f32.partialorder %v285, 0.0
    %v498 = vand.u32 %v285, 2147483648
    %v499 = vsel %vm497, %v498, %v496
    %v500 = vrsqrt.pop %v287
    %v501 = vmul.f32 %v287, %v500
    %vm502 = vcmp.eq.f32.partialorder %v287, inf
    %v503 = vsel %vm502, %v287, %v501
    %vm504 = vcmp.eq.f32.partialorder %v287, 0.0
    %v505 = vand.u32 %v287, 2147483648
    %v506 = vsel %vm504, %v505, %v503
    %v507 = vrsqrt.pop %v289
    %v508 = vmul.f32 %v289, %v507
    %vm509 = vcmp.eq.f32.partialorder %v289, inf
    %v510 = vsel %vm509, %v289, %v508
    %vm511 = vcmp.eq.f32.partialorder %v289, 0.0
    %v512 = vand.u32 %v289, 2147483648
    %v513 = vsel %vm511, %v512, %v510
    %s514 = smul.u32 0, 256
    %s515 = scalar_lea.vmem %s2, %s514
    %v516 = vld [vmem:[%s515] sm:$0xff]
    %v517 = vld [vmem:[%s515 + $0x8] sm:$0xff]
    %v518 = vld [vmem:[%s515 + $0x10] sm:$0xff]
    %v519 = vld [vmem:[%s515 + $0x18] sm:$0xff]
    %v520 = vld [vmem:[%s515 + $0x20] sm:$0xff]
    %v521 = vld [vmem:[%s515 + $0x28] sm:$0xff]
    %v522 = vld [vmem:[%s515 + $0x30] sm:$0xff]
    %v523 = vld [vmem:[%s515 + $0x38] sm:$0xff]
    %v524 = vld [vmem:[%s515 + $0x40] sm:$0xff]
    %v525 = vld [vmem:[%s515 + $0x48] sm:$0xff]
    %v526 = vld [vmem:[%s515 + $0x50] sm:$0xff]
    %v527 = vld [vmem:[%s515 + $0x58] sm:$0xff]
    %v528 = vld [vmem:[%s515 + $0x60] sm:$0xff]
    %v529 = vld [vmem:[%s515 + $0x68] sm:$0xff]
    %v530 = vld [vmem:[%s515 + $0x70] sm:$0xff]
    %v531 = vld [vmem:[%s515 + $0x78] sm:$0xff]
    %v532 = vld [vmem:[%s515 + $0x80] sm:$0xff]
    %v533 = vld [vmem:[%s515 + $0x88] sm:$0xff]
    %v534 = vld [vmem:[%s515 + $0x90] sm:$0xff]
    %v535 = vld [vmem:[%s515 + $0x98] sm:$0xff]
    %v536 = vld [vmem:[%s515 + $0xa0] sm:$0xff]
    %v537 = vld [vmem:[%s515 + $0xa8] sm:$0xff]
    %v538 = vld [vmem:[%s515 + $0xb0] sm:$0xff]
    %v539 = vld [vmem:[%s515 + $0xb8] sm:$0xff]
    %v540 = vld [vmem:[%s515 + $0xc0] sm:$0xff]
    %v541 = vld [vmem:[%s515 + $0xc8] sm:$0xff]
    %v542 = vld [vmem:[%s515 + $0xd0] sm:$0xff]
    %v543 = vld [vmem:[%s515 + $0xd8] sm:$0xff]
    %v544 = vld [vmem:[%s515 + $0xe0] sm:$0xff]
    %v545 = vld [vmem:[%s515 + $0xe8] sm:$0xff]
    %v546 = vld [vmem:[%s515 + $0xf0] sm:$0xff]
    %v547 = vld [vmem:[%s515 + $0xf8] sm:$0xff]
    %v548 = vsub.f32 2.0, %v296
    %v549 = vsub.f32 2.0, %v303
    %v550 = vsub.f32 2.0, %v310
    %v551 = vsub.f32 2.0, %v317
    %v552 = vsub.f32 2.0, %v324
    %v553 = vsub.f32 2.0, %v331
    %v554 = vsub.f32 2.0, %v338
    %v555 = vsub.f32 2.0, %v345
    %v556 = vsub.f32 2.0, %v352
    %v557 = vsub.f32 2.0, %v359
    %v558 = vsub.f32 2.0, %v366
    %v559 = vsub.f32 2.0, %v373
    %v560 = vsub.f32 2.0, %v380
    %v561 = vsub.f32 2.0, %v387
    %v562 = vsub.f32 2.0, %v394
    %v563 = vsub.f32 2.0, %v401
    %v564 = vsub.f32 2.0, %v408
    %v565 = vsub.f32 2.0, %v415
    %v566 = vsub.f32 2.0, %v422
    %v567 = vsub.f32 2.0, %v429
    %v568 = vsub.f32 2.0, %v436
    %v569 = vsub.f32 2.0, %v443
    %v570 = vsub.f32 2.0, %v450
    %v571 = vsub.f32 2.0, %v457
    %v572 = vsub.f32 2.0, %v464
    %v573 = vsub.f32 2.0, %v471
    %v574 = vsub.f32 2.0, %v478
    %v575 = vsub.f32 2.0, %v485
    %v576 = vsub.f32 2.0, %v492
    %v577 = vsub.f32 2.0, %v499
    %v578 = vsub.f32 2.0, %v506
    %v579 = vsub.f32 2.0, %v513
    %v580 = vmax.f32 %v548, 0.0
    %v581 = vmax.f32 %v549, 0.0
    %v582 = vmax.f32 %v550, 0.0
    %v583 = vmax.f32 %v551, 0.0
    %v584 = vmax.f32 %v552, 0.0
    %v585 = vmax.f32 %v553, 0.0
    %v586 = vmax.f32 %v554, 0.0
    %v587 = vmax.f32 %v555, 0.0
    %v588 = vmax.f32 %v556, 0.0
    %v589 = vmax.f32 %v557, 0.0
    %v590 = vmax.f32 %v558, 0.0
    %v591 = vmax.f32 %v559, 0.0
    %v592 = vmax.f32 %v560, 0.0
    %v593 = vmax.f32 %v561, 0.0
    %v594 = vmax.f32 %v562, 0.0
    %v595 = vmax.f32 %v563, 0.0
    %v596 = vmax.f32 %v564, 0.0
    %v597 = vmax.f32 %v565, 0.0
    %v598 = vmax.f32 %v566, 0.0
    %v599 = vmax.f32 %v567, 0.0
    %v600 = vmax.f32 %v568, 0.0
    %v601 = vmax.f32 %v569, 0.0
    %v602 = vmax.f32 %v570, 0.0
    %v603 = vmax.f32 %v571, 0.0
    %v604 = vmax.f32 %v572, 0.0
    %v605 = vmax.f32 %v573, 0.0
    %v606 = vmax.f32 %v574, 0.0
    %v607 = vmax.f32 %v575, 0.0
    %v608 = vmax.f32 %v576, 0.0
    %v609 = vmax.f32 %v577, 0.0
    %v610 = vmax.f32 %v578, 0.0
    %v611 = vmax.f32 %v579, 0.0
    %v612 = vmul.f32 %v516, %v227
    %v613 = vmul.f32 %v517, %v229
    %v614 = vmul.f32 %v518, %v231
    %v615 = vmul.f32 %v519, %v233
    %v616 = vmul.f32 %v520, %v235
    %v617 = vmul.f32 %v521, %v237
    %v618 = vmul.f32 %v522, %v239
    %v619 = vmul.f32 %v523, %v241
    %v620 = vmul.f32 %v524, %v243
    %v621 = vmul.f32 %v525, %v245
    %v622 = vmul.f32 %v526, %v247
    %v623 = vmul.f32 %v527, %v249
    %v624 = vmul.f32 %v528, %v251
    %v625 = vmul.f32 %v529, %v253
    %v626 = vmul.f32 %v530, %v255
    %v627 = vmul.f32 %v531, %v257
    %v628 = vmul.f32 %v532, %v259
    %v629 = vmul.f32 %v533, %v261
    %v630 = vmul.f32 %v534, %v263
    %v631 = vmul.f32 %v535, %v265
    %v632 = vmul.f32 %v536, %v267
    %v633 = vmul.f32 %v537, %v269
    %v634 = vmul.f32 %v538, %v271
    %v635 = vmul.f32 %v539, %v273
    %v636 = vmul.f32 %v540, %v275
    %v637 = vmul.f32 %v541, %v277
    %v638 = vmul.f32 %v542, %v279
    %v639 = vmul.f32 %v543, %v281
    %v640 = vmul.f32 %v544, %v283
    %v641 = vmul.f32 %v545, %v285
    %v642 = vmul.f32 %v546, %v287
    %v643 = vmul.f32 %v547, %v289
    %v644 = vsub.f32 1.0, %v516
    %v645 = vsub.f32 1.0, %v517
    %v646 = vsub.f32 1.0, %v518
    %v647 = vsub.f32 1.0, %v519
    %v648 = vsub.f32 1.0, %v520
    %v649 = vsub.f32 1.0, %v521
    %v650 = vsub.f32 1.0, %v522
    %v651 = vsub.f32 1.0, %v523
    %v652 = vsub.f32 1.0, %v524
    %v653 = vsub.f32 1.0, %v525
    %v654 = vsub.f32 1.0, %v526
    %v655 = vsub.f32 1.0, %v527
    %v656 = vsub.f32 1.0, %v528
    %v657 = vsub.f32 1.0, %v529
    %v658 = vsub.f32 1.0, %v530
    %v659 = vsub.f32 1.0, %v531
    %v660 = vsub.f32 1.0, %v532
    %v661 = vsub.f32 1.0, %v533
    %v662 = vsub.f32 1.0, %v534
    %v663 = vsub.f32 1.0, %v535
    %v664 = vsub.f32 1.0, %v536
    %v665 = vsub.f32 1.0, %v537
    %v666 = vsub.f32 1.0, %v538
    %v667 = vsub.f32 1.0, %v539
    %v668 = vsub.f32 1.0, %v540
    %v669 = vsub.f32 1.0, %v541
    %v670 = vsub.f32 1.0, %v542
    %v671 = vsub.f32 1.0, %v543
    %v672 = vsub.f32 1.0, %v544
    %v673 = vsub.f32 1.0, %v545
    %v674 = vsub.f32 1.0, %v546
    %v675 = vsub.f32 1.0, %v547
    %v676 = vmul.f32 %v580, %v580
    %v677 = vmul.f32 %v581, %v581
    %v678 = vmul.f32 %v582, %v582
    %v679 = vmul.f32 %v583, %v583
    %v680 = vmul.f32 %v584, %v584
    %v681 = vmul.f32 %v585, %v585
    %v682 = vmul.f32 %v586, %v586
    %v683 = vmul.f32 %v587, %v587
    %v684 = vmul.f32 %v588, %v588
    %v685 = vmul.f32 %v589, %v589
    %v686 = vmul.f32 %v590, %v590
    %v687 = vmul.f32 %v591, %v591
    %v688 = vmul.f32 %v592, %v592
    %v689 = vmul.f32 %v593, %v593
    %v690 = vmul.f32 %v594, %v594
    %v691 = vmul.f32 %v595, %v595
    %v692 = vmul.f32 %v596, %v596
    %v693 = vmul.f32 %v597, %v597
    %v694 = vmul.f32 %v598, %v598
    %v695 = vmul.f32 %v599, %v599
    %v696 = vmul.f32 %v600, %v600
    %v697 = vmul.f32 %v601, %v601
    %v698 = vmul.f32 %v602, %v602
    %v699 = vmul.f32 %v603, %v603
    %v700 = vmul.f32 %v604, %v604
    %v701 = vmul.f32 %v605, %v605
    %v702 = vmul.f32 %v606, %v606
    %v703 = vmul.f32 %v607, %v607
    %v704 = vmul.f32 %v608, %v608
    %v705 = vmul.f32 %v609, %v609
    %v706 = vmul.f32 %v610, %v610
    %v707 = vmul.f32 %v611, %v611
    %v708 = vmul.f32 %v644, %v676
    %v709 = vmul.f32 %v645, %v677
    %v710 = vmul.f32 %v646, %v678
    %v711 = vmul.f32 %v647, %v679
    %v712 = vmul.f32 %v648, %v680
    %v713 = vmul.f32 %v649, %v681
    %v714 = vmul.f32 %v650, %v682
    %v715 = vmul.f32 %v651, %v683
    %v716 = vmul.f32 %v652, %v684
    %v717 = vmul.f32 %v653, %v685
    %v718 = vmul.f32 %v654, %v686
    %v719 = vmul.f32 %v655, %v687
    %v720 = vmul.f32 %v656, %v688
    %v721 = vmul.f32 %v657, %v689
    %v722 = vmul.f32 %v658, %v690
    %v723 = vmul.f32 %v659, %v691
    %v724 = vmul.f32 %v660, %v692
    %v725 = vmul.f32 %v661, %v693
    %v726 = vmul.f32 %v662, %v694
    %v727 = vmul.f32 %v663, %v695
    %v728 = vmul.f32 %v664, %v696
    %v729 = vmul.f32 %v665, %v697
    %v730 = vmul.f32 %v666, %v698
    %v731 = vmul.f32 %v667, %v699
    %v732 = vmul.f32 %v668, %v700
    %v733 = vmul.f32 %v669, %v701
    %v734 = vmul.f32 %v670, %v702
    %v735 = vmul.f32 %v671, %v703
    %v736 = vmul.f32 %v672, %v704
    %v737 = vmul.f32 %v673, %v705
    %v738 = vmul.f32 %v674, %v706
    %v739 = vmul.f32 %v675, %v707
    %v740 = vadd.f32 %v612, %v708
    %v741 = vadd.f32 %v613, %v709
    %v742 = vadd.f32 %v614, %v710
    %v743 = vadd.f32 %v615, %v711
    %v744 = vadd.f32 %v616, %v712
    %v745 = vadd.f32 %v617, %v713
    %v746 = vadd.f32 %v618, %v714
    %v747 = vadd.f32 %v619, %v715
    %v748 = vadd.f32 %v620, %v716
    %v749 = vadd.f32 %v621, %v717
    %v750 = vadd.f32 %v622, %v718
    %v751 = vadd.f32 %v623, %v719
    %v752 = vadd.f32 %v624, %v720
    %v753 = vadd.f32 %v625, %v721
    %v754 = vadd.f32 %v626, %v722
    %v755 = vadd.f32 %v627, %v723
    %v756 = vadd.f32 %v628, %v724
    %v757 = vadd.f32 %v629, %v725
    %v758 = vadd.f32 %v630, %v726
    %v759 = vadd.f32 %v631, %v727
    %v760 = vadd.f32 %v632, %v728
    %v761 = vadd.f32 %v633, %v729
    %v762 = vadd.f32 %v634, %v730
    %v763 = vadd.f32 %v635, %v731
    %v764 = vadd.f32 %v636, %v732
    %v765 = vadd.f32 %v637, %v733
    %v766 = vadd.f32 %v638, %v734
    %v767 = vadd.f32 %v639, %v735
    %v768 = vadd.f32 %v640, %v736
    %v769 = vadd.f32 %v641, %v737
    %v770 = vadd.f32 %v642, %v738
    %v771 = vadd.f32 %v643, %v739
    %v772 = vld [vmem:[#allocation2] sm:$0xff]
    %v773 = vld [vmem:[#allocation2 + $0x8] sm:$0xff]
    %v774 = vld [vmem:[#allocation2 + $0x10] sm:$0xff]
    %v775 = vld [vmem:[#allocation2 + $0x18] sm:$0xff]
    %v776 = vld [vmem:[#allocation2 + $0x20] sm:$0xff]
    %v777 = vld [vmem:[#allocation2 + $0x28] sm:$0xff]
    %v778 = vld [vmem:[#allocation2 + $0x30] sm:$0xff]
    %v779 = vld [vmem:[#allocation2 + $0x38] sm:$0xff]
    %v780 = vld [vmem:[#allocation2 + $0x40] sm:$0xff]
    %v781 = vld [vmem:[#allocation2 + $0x48] sm:$0xff]
    %v782 = vld [vmem:[#allocation2 + $0x50] sm:$0xff]
    %v783 = vld [vmem:[#allocation2 + $0x58] sm:$0xff]
    %v784 = vld [vmem:[#allocation2 + $0x60] sm:$0xff]
    %v785 = vld [vmem:[#allocation2 + $0x68] sm:$0xff]
    %v786 = vld [vmem:[#allocation2 + $0x70] sm:$0xff]
    %v787 = vld [vmem:[#allocation2 + $0x78] sm:$0xff]
    %v788 = vld [vmem:[#allocation2 + $0x80] sm:$0xff]
    %v789 = vld [vmem:[#allocation2 + $0x88] sm:$0xff]
    %v790 = vld [vmem:[#allocation2 + $0x90] sm:$0xff]
    %v791 = vld [vmem:[#allocation2 + $0x98] sm:$0xff]
    %v792 = vld [vmem:[#allocation2 + $0xa0] sm:$0xff]
    %v793 = vld [vmem:[#allocation2 + $0xa8] sm:$0xff]
    %v794 = vld [vmem:[#allocation2 + $0xb0] sm:$0xff]
    %v795 = vld [vmem:[#allocation2 + $0xb8] sm:$0xff]
    %v796 = vld [vmem:[#allocation2 + $0xc0] sm:$0xff]
    %v797 = vld [vmem:[#allocation2 + $0xc8] sm:$0xff]
    %v798 = vld [vmem:[#allocation2 + $0xd0] sm:$0xff]
    %v799 = vld [vmem:[#allocation2 + $0xd8] sm:$0xff]
    %v800 = vld [vmem:[#allocation2 + $0xe0] sm:$0xff]
    %v801 = vld [vmem:[#allocation2 + $0xe8] sm:$0xff]
    %v802 = vld [vmem:[#allocation2 + $0xf0] sm:$0xff]
    %v803 = vld [vmem:[#allocation2 + $0xf8] sm:$0xff]
    %v804 = vadd.f32 %v772, %v740
    %v805 = vadd.f32 %v773, %v741
    %v806 = vadd.f32 %v774, %v742
    %v807 = vadd.f32 %v775, %v743
    %v808 = vadd.f32 %v776, %v744
    %v809 = vadd.f32 %v777, %v745
    %v810 = vadd.f32 %v778, %v746
    %v811 = vadd.f32 %v779, %v747
    %v812 = vadd.f32 %v780, %v748
    %v813 = vadd.f32 %v781, %v749
    %v814 = vadd.f32 %v782, %v750
    %v815 = vadd.f32 %v783, %v751
    %v816 = vadd.f32 %v784, %v752
    %v817 = vadd.f32 %v785, %v753
    %v818 = vadd.f32 %v786, %v754
    %v819 = vadd.f32 %v787, %v755
    %v820 = vadd.f32 %v788, %v756
    %v821 = vadd.f32 %v789, %v757
    %v822 = vadd.f32 %v790, %v758
    %v823 = vadd.f32 %v791, %v759
    %v824 = vadd.f32 %v792, %v760
    %v825 = vadd.f32 %v793, %v761
    %v826 = vadd.f32 %v794, %v762
    %v827 = vadd.f32 %v795, %v763
    %v828 = vadd.f32 %v796, %v764
    %v829 = vadd.f32 %v797, %v765
    %v830 = vadd.f32 %v798, %v766
    %v831 = vadd.f32 %v799, %v767
    %v832 = vadd.f32 %v800, %v768
    %v833 = vadd.f32 %v801, %v769
    %v834 = vadd.f32 %v802, %v770
    %v835 = vadd.f32 %v803, %v771
    %vm836 = vcmask 7168
    %837 = vst.msk [vmem:[#allocation2] sm:$0xff] %vm836, %v804
    %838 = vst.msk [vmem:[#allocation2 + $0x8] sm:$0xff] %vm836, %v805
    %839 = vst.msk [vmem:[#allocation2 + $0x10] sm:$0xff] %vm836, %v806
    %840 = vst.msk [vmem:[#allocation2 + $0x18] sm:$0xff] %vm836, %v807
    %841 = vst.msk [vmem:[#allocation2 + $0x20] sm:$0xff] %vm836, %v808
    %842 = vst.msk [vmem:[#allocation2 + $0x28] sm:$0xff] %vm836, %v809
    %843 = vst.msk [vmem:[#allocation2 + $0x30] sm:$0xff] %vm836, %v810
    %844 = vst.msk [vmem:[#allocation2 + $0x38] sm:$0xff] %vm836, %v811
    %845 = vst.msk [vmem:[#allocation2 + $0x40] sm:$0xff] %vm836, %v812
    %846 = vst.msk [vmem:[#allocation2 + $0x48] sm:$0xff] %vm836, %v813
    %847 = vst.msk [vmem:[#allocation2 + $0x50] sm:$0xff] %vm836, %v814
    %848 = vst.msk [vmem:[#allocation2 + $0x58] sm:$0xff] %vm836, %v815
    %849 = vst.msk [vmem:[#allocation2 + $0x60] sm:$0xff] %vm836, %v816
    %850 = vst.msk [vmem:[#allocation2 + $0x68] sm:$0xff] %vm836, %v817
    %851 = vst.msk [vmem:[#allocation2 + $0x70] sm:$0xff] %vm836, %v818
    %852 = vst.msk [vmem:[#allocation2 + $0x78] sm:$0xff] %vm836, %v819
    %853 = vst.msk [vmem:[#allocation2 + $0x80] sm:$0xff] %vm836, %v820
    %854 = vst.msk [vmem:[#allocation2 + $0x88] sm:$0xff] %vm836, %v821
    %855 = vst.msk [vmem:[#allocation2 + $0x90] sm:$0xff] %vm836, %v822
    %856 = vst.msk [vmem:[#allocation2 + $0x98] sm:$0xff] %vm836, %v823
    %857 = vst.msk [vmem:[#allocation2 + $0xa0] sm:$0xff] %vm836, %v824
    %858 = vst.msk [vmem:[#allocation2 + $0xa8] sm:$0xff] %vm836, %v825
    %859 = vst.msk [vmem:[#allocation2 + $0xb0] sm:$0xff] %vm836, %v826
    %860 = vst.msk [vmem:[#allocation2 + $0xb8] sm:$0xff] %vm836, %v827
    %861 = vst.msk [vmem:[#allocation2 + $0xc0] sm:$0xff] %vm836, %v828
    %862 = vst.msk [vmem:[#allocation2 + $0xc8] sm:$0xff] %vm836, %v829
    %863 = vst.msk [vmem:[#allocation2 + $0xd0] sm:$0xff] %vm836, %v830
    %864 = vst.msk [vmem:[#allocation2 + $0xd8] sm:$0xff] %vm836, %v831
    %865 = vst.msk [vmem:[#allocation2 + $0xe0] sm:$0xff] %vm836, %v832
    %866 = vst.msk [vmem:[#allocation2 + $0xe8] sm:$0xff] %vm836, %v833
    %867 = vst.msk [vmem:[#allocation2 + $0xf0] sm:$0xff] %vm836, %v834
    %868 = vst.msk [vmem:[#allocation2 + $0xf8] sm:$0xff] %vm836, %v835
    // Predicated region
    $region22: #{tpu_custom_call.1} parent=1 // pred_check
      %p869 = pneg %p29
    $region23: #{tpu_custom_call.1} parent=1 // pred_check_branch
      %871 = sbr.rel (%p869) target = $region25
    $region24: #{tpu_custom_call.1} parent=1 // pred_region
      %v872 = vld [vmem:[#allocation2] sm:$0xff]
      %v873 = vld [vmem:[#allocation2 + $0x8] sm:$0xff]
      %v874 = vld [vmem:[#allocation2 + $0x10] sm:$0xff]
      %v875 = vld [vmem:[#allocation2 + $0x18] sm:$0xff]
      %v876 = vld [vmem:[#allocation2 + $0x20] sm:$0xff]
      %v877 = vld [vmem:[#allocation2 + $0x28] sm:$0xff]
      %v878 = vld [vmem:[#allocation2 + $0x30] sm:$0xff]
      %v879 = vld [vmem:[#allocation2 + $0x38] sm:$0xff]
      %v880 = vld [vmem:[#allocation2 + $0x40] sm:$0xff]
      %v881 = vld [vmem:[#allocation2 + $0x48] sm:$0xff]
      %v882 = vld [vmem:[#allocation2 + $0x50] sm:$0xff]
      %v883 = vld [vmem:[#allocation2 + $0x58] sm:$0xff]
      %v884 = vld [vmem:[#allocation2 + $0x60] sm:$0xff]
      %v885 = vld [vmem:[#allocation2 + $0x68] sm:$0xff]
      %v886 = vld [vmem:[#allocation2 + $0x70] sm:$0xff]
      %v887 = vld [vmem:[#allocation2 + $0x78] sm:$0xff]
      %v888 = vld [vmem:[#allocation2 + $0x80] sm:$0xff]
      %v889 = vld [vmem:[#allocation2 + $0x88] sm:$0xff]
      %v890 = vld [vmem:[#allocation2 + $0x90] sm:$0xff]
      %v891 = vld [vmem:[#allocation2 + $0x98] sm:$0xff]
      %v892 = vld [vmem:[#allocation2 + $0xa0] sm:$0xff]
      %v893 = vld [vmem:[#allocation2 + $0xa8] sm:$0xff]
      %v894 = vld [vmem:[#allocation2 + $0xb0] sm:$0xff]
      %v895 = vld [vmem:[#allocation2 + $0xb8] sm:$0xff]
      %v896 = vld [vmem:[#allocation2 + $0xc0] sm:$0xff]
      %v897 = vld [vmem:[#allocation2 + $0xc8] sm:$0xff]
      %v898 = vld [vmem:[#allocation2 + $0xd0] sm:$0xff]
      %v899 = vld [vmem:[#allocation2 + $0xd8] sm:$0xff]
      %v900 = vld [vmem:[#allocation2 + $0xe0] sm:$0xff]
      %v901 = vld [vmem:[#allocation2 + $0xe8] sm:$0xff]
      %v902 = vld [vmem:[#allocation2 + $0xf0] sm:$0xff]
      %v903 = vld [vmem:[#allocation2 + $0xf8] sm:$0xff]
      %v904 = vsel %vm836, %v872, 0.0
      %v905 = vsel %vm836, %v873, 0.0
      %v906 = vadd.f32 %v904, %v905
      %v907 = vsel %vm836, %v874, 0.0
      %v908 = vadd.f32 %v906, %v907
      %v909 = vsel %vm836, %v875, 0.0
      %v910 = vadd.f32 %v908, %v909
      %v911 = vsel %vm836, %v876, 0.0
      %v912 = vadd.f32 %v910, %v911
      %v913 = vsel %vm836, %v877, 0.0
      %v914 = vadd.f32 %v912, %v913
      %v915 = vsel %vm836, %v878, 0.0
      %v916 = vadd.f32 %v914, %v915
      %v917 = vsel %vm836, %v879, 0.0
      %v918 = vadd.f32 %v916, %v917
      %v919 = vsel %vm836, %v880, 0.0
      %v920 = vadd.f32 %v918, %v919
      %v921 = vsel %vm836, %v881, 0.0
      %v922 = vadd.f32 %v920, %v921
      %v923 = vsel %vm836, %v882, 0.0
      %v924 = vadd.f32 %v922, %v923
      %v925 = vsel %vm836, %v883, 0.0
      %v926 = vadd.f32 %v924, %v925
      %v927 = vsel %vm836, %v884, 0.0
      %v928 = vadd.f32 %v926, %v927
      %v929 = vsel %vm836, %v885, 0.0
      %v930 = vadd.f32 %v928, %v929
      %v931 = vsel %vm836, %v886, 0.0
      %v932 = vadd.f32 %v930, %v931
      %v933 = vsel %vm836, %v887, 0.0
      %v934 = vadd.f32 %v932, %v933
      %v935 = vsel %vm836, %v888, 0.0
      %v936 = vadd.f32 %v934, %v935
      %v937 = vsel %vm836, %v889, 0.0
      %v938 = vadd.f32 %v936, %v937
      %v939 = vsel %vm836, %v890, 0.0
      %v940 = vadd.f32 %v938, %v939
      %v941 = vsel %vm836, %v891, 0.0
      %v942 = vadd.f32 %v940, %v941
      %v943 = vsel %vm836, %v892, 0.0
      %v944 = vadd.f32 %v942, %v943
      %v945 = vsel %vm836, %v893, 0.0
      %v946 = vadd.f32 %v944, %v945
      %v947 = vsel %vm836, %v894, 0.0
      %v948 = vadd.f32 %v946, %v947
      %v949 = vsel %vm836, %v895, 0.0
      %v950 = vadd.f32 %v948, %v949
      %v951 = vsel %vm836, %v896, 0.0
      %v952 = vadd.f32 %v950, %v951
      %v953 = vsel %vm836, %v897, 0.0
      %v954 = vadd.f32 %v952, %v953
      %v955 = vsel %vm836, %v898, 0.0
      %v956 = vadd.f32 %v954, %v955
      %v957 = vsel %vm836, %v899, 0.0
      %v958 = vadd.f32 %v956, %v957
      %v959 = vsel %vm836, %v900, 0.0
      %v960 = vadd.f32 %v958, %v959
      %v961 = vsel %vm836, %v901, 0.0
      %v962 = vadd.f32 %v960, %v961
      %v963 = vsel %vm836, %v902, 0.0
      %v964 = vadd.f32 %v962, %v963
      %v965 = vsel %vm836, %v903, 0.0
      %v966 = vadd.f32 %v964, %v965
      %967 = vadd.xlane.f32.xlu0 %v966
      %v968 = vpop.xlane.xlu0 %967
      %v969 = vrot.slane %v968, 4
      %v970 = vadd.f32 %v968, %v969
      %v971 = vrot.slane %v970, 2
      %v972 = vadd.f32 %v970, %v971
      %v973 = vrot.slane %v972, 1
      %v974 = vadd.f32 %v972, %v973
      %s975 = vtos %v974
      %v976 = vstv %s975
      %vm977 = vcmask 0
      %978 = vst.msk [vmem:[#allocation6] sm:$0x1] %vm977, %v976
    $region25: #{tpu_custom_call.1} parent=1 // pred_fallthru
      _
    // Predicated region
    $region26: #{tpu_custom_call.1} parent=1 // pred_check
      _
    $region27: #{tpu_custom_call.1} parent=1 // pred_check_branch
      %980 = sbr.rel (0) target = $region29
    $region28: #{tpu_custom_call.1} parent=1 // pred_region
      %s982 = ssub.s32 16, 16
      %983 = vsyncadd [#allocation5], %s982
      %s985 = sshll.u32 [#allocation6], 4
      %s986 = int_to_ptr.vmem [resolvable:$true] %s985
      %988 = dma.vmem_to_hbm [thread:$0]  %s986, 16, %s3, [#allocation5]
    $region29: #{tpu_custom_call.1} parent=1 // pred_fallthru
      _
    // Predicated region
    $region30: #{tpu_custom_call.1} parent=1 // pred_check
      _
    $region31: #{tpu_custom_call.1} parent=1 // pred_check_branch
      %990 = sbr.rel (0) target = $region33
    $region32: #{tpu_custom_call.1} parent=1 // pred_region
      %991 = dma.done [#allocation5], 16
    $region33: #{tpu_custom_call.1} parent=1 // pred_fallthru
      _
    %992 = vsyncpa [#allocation4], 1
    %993 = vsyncpa [#allocation5], 1

</llo_original>
